<compile_context>
chip_gen: v7x
topology: tpu7x:2x2x1
jax: 0.10.0
libtpu: 0.0.40
codegen_flags: <defaults>
</compile_context>

<pallas_src>
import functools

import jax
import jax.numpy as jnp
from jax.experimental import pallas as pl
from jax.experimental.pallas import tpu as pltpu


def _trans_conv_kernel(x_ref, wf_ref, shift_ref, out_ref, *, c_out, n_time, is_last):
    # x_ref block: (1, C_in, F*T)  (F*T on the lane axis, T minor)
    x = x_ref[0]                                            # (C_in, F*T)
    c_in, ft = x.shape

    # kw = 1 time tap: x shifted right by one time step, zero at t == 0 of every frequency row.
    shifted = jnp.concatenate([jnp.zeros((c_in, 1), x.dtype), x[:, :-1]], axis=1)
    t_idx = jax.lax.broadcasted_iota(jnp.int32, (1, ft), 1) % n_time   # one row, broadcast below
    x_prev = jnp.where(t_idx == 0, 0.0, shifted)

    # Augmented input: rows [0, C_in) = kw=0 tap, rows [C_in, 2*C_in) = kw=1 tap.
    xa = jnp.concatenate([x, x_prev], axis=0)               # (2*C_in, F*T)

    # ONE fused MXU matmul: all 3 kh taps x 2 kw taps x channel mix, BN scale pre-folded.
    y = jnp.dot(wf_ref[...], xa, preferred_element_type=jnp.float32)   # (3*C_out, F*T)

    y0 = y[0:c_out]                 # kh = 0 contribution
    y1 = y[c_out:2 * c_out]         # kh = 1 contribution
    y2 = y[2 * c_out:3 * c_out]     # kh = 2 contribution

    zpad = jnp.zeros((c_out, n_time), jnp.float32)
    # Even output rows fo = 2m, m in [0, F]:  y0[m] (m < F)  +  y2[m-1] (m >= 1)
    even = jnp.concatenate([y0, zpad], axis=1) + jnp.concatenate([zpad, y2], axis=1)
    # Odd output rows fo = 2m+1, m in [0, F-1]: y1[m]  (the m = F slot is padding, sliced off later)
    odd = jnp.concatenate([y1, zpad], axis=1)

    shift = shift_ref[...]                                  # (C_out, 1): BN shift + folded conv bias
    even = even + shift
    odd = odd + shift

    if is_last:                                             # ReLU
        even = jnp.maximum(even, 0.0)
        odd = jnp.maximum(odd, 0.0)
    else:                                                   # ELU (alpha = 1), exp on the EUP
        even = jnp.where(even > 0, even, jnp.exp(jnp.minimum(even, 0.0)) - 1.0)
        odd = jnp.where(odd > 0, odd, jnp.exp(jnp.minimum(odd, 0.0)) - 1.0)

    # Single stacked output: slot 0 = even frequency rows, slot 1 = odd frequency rows.
    out_ref[0, 0] = even.astype(out_ref.dtype)
    out_ref[0, 1] = odd.astype(out_ref.dtype)


def non_causal_trans_conv_block_pallas(x, conv_w, conv_b, bn_gamma, bn_beta, bn_mean, bn_var,
                                       *, eps=1e-5, is_last=False):
    """x: (N, C_in, F, T) NCHW.  conv_w: (C_in, C_out, 3, 2) (PyTorch ConvTranspose2d layout)."""
    N, C_in, F, T = x.shape
    C_out = conv_w.shape[1]
    FT = F * T

    # Fold eval-mode BatchNorm + conv bias into per-output-channel scale / shift.
    scale = bn_gamma * jax.lax.rsqrt(bn_var + eps)                      # (C_out,)
    shift = bn_beta + scale * (conv_b - bn_mean)                        # (C_out,)

    # Fused weight: Wf[kh*C_out + co, kw*C_in + ci] = scale[co] * w[ci, co, kh, kw]
    wk = jnp.transpose(conv_w, (2, 1, 0, 3))                            # (3, C_out, C_in, 2)
    wf = jnp.concatenate([wk[..., 0], wk[..., 1]], axis=2)              # (3, C_out, 2*C_in)
    wf = (wf * scale[None, :, None]).reshape(3 * C_out, 2 * C_in).astype(jnp.float32)
    shift2d = shift.reshape(C_out, 1).astype(jnp.float32)

    xr = x.reshape(N, C_in, FT)     # free reshape, no HBM transpose

    kernel = functools.partial(_trans_conv_kernel, c_out=C_out, n_time=T, is_last=is_last)

    out_k = pl.pallas_call(
        kernel,
        out_shape=jax.ShapeDtypeStruct((N, 2, C_out, (F + 1) * T), x.dtype),
        grid_spec=pltpu.PrefetchScalarGridSpec(
            num_scalar_prefetch=0,
            grid=(N,),
            in_specs=[
                pl.BlockSpec((1, C_in, FT), lambda n: (n, 0, 0)),            # activations
                pl.BlockSpec((3 * C_out, 2 * C_in), lambda n: (0, 0)),       # fused conv+BN weight
                pl.BlockSpec((C_out, 1), lambda n: (0, 0)),                  # fused bias/BN shift
            ],
            out_specs=pl.BlockSpec((1, 2, C_out, (F + 1) * T),
                                   lambda n: (n, 0, 0, 0)),                  # [even; odd] stacked
        ),
        compiler_params=pltpu.CompilerParams(
            dimension_semantics=("parallel",),
        ),
    )(xr, wf, shift2d)

    # Interleave even/odd frequency rows: (m, p) -> fo = 2*m + p.  Single small fused XLA op;
    # the trailing padded odd row (fo = 2F+1) is sliced off to give F_out = 2*F + 1.
    out = out_k.reshape(N, 2, C_out, F + 1, T)
    out = jnp.transpose(out, (0, 2, 3, 1, 4)).reshape(N, C_out, 2 * (F + 1), T)
    return out[:, :, :2 * F + 1, :]


def non_causal_trans_conv_block_ref(x, conv_w, conv_b, bn_gamma, bn_beta, bn_mean, bn_var,
                                    *, eps=1e-5, is_last=False):
    """Pure-JAX reference matching the PyTorch forward (eval mode)."""
    N, C_in, F, T = x.shape
    out = jnp.zeros((N, conv_w.shape[1], 2 * F + 1, T + 1), jnp.float32)
    for kh in range(3):
        for kw in range(2):
            contrib = jnp.einsum('ncft,cd->ndft', x, conv_w[:, :, kh, kw])
            out = out.at[:, :, kh:kh + 2 * F:2, kw:kw + T].add(contrib)
    out = out + conv_b[None, :, None, None]
    out = out[:, :, :, :-1]                                              # drop last time step
    out = (out - bn_mean[None, :, None, None]) * jax.lax.rsqrt(bn_var[None, :, None, None] + eps)
    out = out * bn_gamma[None, :, None, None] + bn_beta[None, :, None, None]
    return jnp.maximum(out, 0.0) if is_last else jax.nn.elu(out)


if __name__ == "__main__":
    # Small shapes consistent with the module: [B, C, F, T]; F*T = 128 keeps the lane axis dense.
    N, C_in, C_out, F, T = 2, 16, 16, 16, 8
    key = jax.random.PRNGKey(0)
    ks = jax.random.split(key, 7)

    x = jax.random.normal(ks[0], (N, C_in, F, T), dtype=jnp.float32)
    conv_w = jax.random.normal(ks[1], (C_in, C_out, 3, 2), dtype=jnp.float32) * 0.2
    conv_b = jax.random.normal(ks[2], (C_out,), dtype=jnp.float32) * 0.1
    bn_gamma = 1.0 + 0.1 * jax.random.normal(ks[3], (C_out,), dtype=jnp.float32)
    bn_beta = 0.1 * jax.random.normal(ks[4], (C_out,), dtype=jnp.float32)
    bn_mean = 0.1 * jax.random.normal(ks[5], (C_out,), dtype=jnp.float32)
    bn_var = jnp.abs(jax.random.normal(ks[6], (C_out,), dtype=jnp.float32)) + 0.5

    out = non_causal_trans_conv_block_pallas(x, conv_w, conv_b, bn_gamma, bn_beta,
                                             bn_mean, bn_var, eps=1e-5, is_last=False)
    out = jax.block_until_ready(out)

    ref = non_causal_trans_conv_block_ref(x, conv_w, conv_b, bn_gamma, bn_beta,
                                          bn_mean, bn_var, eps=1e-5, is_last=False)
    assert out.shape == (N, C_out, 2 * F + 1, T), out.shape
    assert jnp.allclose(out, ref, rtol=1e-4, atol=1e-4), float(jnp.max(jnp.abs(out - ref)))

    # Also exercise the is_last=True (ReLU) path once.
    out_r = non_causal_trans_conv_block_pallas(x, conv_w, conv_b, bn_gamma, bn_beta,
                                               bn_mean, bn_var, eps=1e-5, is_last=True)
    out_r = jax.block_until_ready(out_r)
    ref_r = non_causal_trans_conv_block_ref(x, conv_w, conv_b, bn_gamma, bn_beta,
                                            bn_mean, bn_var, eps=1e-5, is_last=True)
    assert jnp.allclose(out_r, ref_r, rtol=1e-4, atol=1e-4), float(jnp.max(jnp.abs(out_r - ref_r)))

    print("KERNEL_OK")
</pallas_src>

<mosaic_0001>
module attributes {stable_mosaic.version = 11 : i64} {
  func.func @_trans_conv_kernel(%arg0: i32, %arg1: memref<1x16x128xf32, #tpu.memory_space<vmem>>, %arg2: memref<48x32xf32, #tpu.memory_space<vmem>>, %arg3: memref<16x1xf32, #tpu.memory_space<vmem>>, %arg4: memref<1x2x16x136xf32, #tpu.memory_space<vmem>>) attributes {dimension_semantics = [#tpu.dimension_semantics<parallel>], iteration_bounds = array<i64: 2>, scalar_prefetch = 0 : i64, scratch_operands = 0 : i64, tpu.core_type = #tpu.core_type<tc>, window_params = [{transform_indices = @transform_0, window_bounds = array<i64: 1, 16, 128>}, {pipeline_mode = #tpu.pipeline_mode<synchronous>, transform_indices = @transform_1, window_bounds = array<i64: 48, 32>}, {pipeline_mode = #tpu.pipeline_mode<synchronous>, transform_indices = @transform_2, window_bounds = array<i64: 16, 1>}, {transform_indices = @transform_3, window_bounds = array<i64: 1, 2, 16, 136>}]} {
    %c0 = arith.constant 0 : index
    %c0_0 = arith.constant 0 : index
    %c0_1 = arith.constant 0 : index
    %0 = vector.load %arg1[%c0, %c0_0, %c0_1] : memref<1x16x128xf32, #tpu.memory_space<vmem>>, vector<1x16x128xf32>
    %1 = vector.shape_cast %0 : vector<1x16x128xf32> to vector<16x128xf32>
    %cst = arith.constant 0.000000e+00 : f32
    %2 = vector.broadcast %cst : f32 to vector<16x1xf32>
    %3 = vector.extract_strided_slice %1 {offsets = [0, 0], sizes = [16, 127], strides = [1, 1]} : vector<16x128xf32> to vector<16x127xf32>
    %4 = tpu.concatenate %2, %3 in 1 : vector<16x1xf32>, vector<16x127xf32> -> vector<16x128xf32>
    %5 = tpu.iota {dimensions = array<i32: 1>} : vector<1x128xi32>
    %c8_i32 = arith.constant 8 : i32
    %c0_i32 = arith.constant 0 : i32
    %6 = arith.cmpi eq, %c8_i32, %c0_i32 : i32
    %c1_i32 = arith.constant 1 : i32
    %7 = arith.select %6, %c1_i32, %c8_i32 : i32
    %8 = vector.broadcast %7 : i32 to vector<1x128xi32>
    %9 = arith.remsi %5, %8 : vector<1x128xi32>
    %c0_i32_2 = arith.constant 0 : i32
    %10 = vector.broadcast %c0_i32_2 : i32 to vector<1x128xi32>
    %11 = arith.cmpi ne, %9, %10 : vector<1x128xi32>
    %c0_i32_3 = arith.constant 0 : i32
    %12 = vector.broadcast %c0_i32_3 : i32 to vector<1x128xi32>
    %13 = arith.cmpi slt, %9, %12 : vector<1x128xi32>
    %c0_i32_4 = arith.constant 0 : i32
    %14 = arith.cmpi slt, %7, %c0_i32_4 : i32
    %15 = vector.broadcast %14 : i1 to vector<1x128xi1>
    %16 = vector.broadcast %15 : vector<1x128xi1> to vector<1x128xi1>
    %17 = arith.xori %13, %16 : vector<1x128xi1>
    %18 = arith.andi %17, %11 : vector<1x128xi1>
    %19 = vector.broadcast %7 : i32 to vector<1x128xi32>
    %20 = arith.addi %9, %19 : vector<1x128xi32>
    %21 = arith.select %18, %20, %9 : vector<1x128xi1>, vector<1x128xi32>
    %c0_i32_5 = arith.constant 0 : i32
    %22 = vector.broadcast %c0_i32_5 : i32 to vector<1x128xi32>
    %23 = arith.cmpi eq, %21, %22 : vector<1x128xi32>
    %cst_6 = arith.constant 0.000000e+00 : f32
    %24 = vector.shape_cast %23 : vector<1x128xi1> to vector<1x128xi1>
    %25 = vector.broadcast %24 : vector<1x128xi1> to vector<16x128xi1>
    %26 = vector.broadcast %cst_6 : f32 to vector<16x128xf32>
    %27 = arith.select %25, %26, %4 : vector<16x128xi1>, vector<16x128xf32>
    %28 = tpu.concatenate %1, %27 in 0 : vector<16x128xf32>, vector<16x128xf32> -> vector<32x128xf32>
    %c0_7 = arith.constant 0 : index
    %c0_8 = arith.constant 0 : index
    %29 = vector.load %arg2[%c0_7, %c0_8] : memref<48x32xf32, #tpu.memory_space<vmem>>, vector<48x32xf32>
    %cst_9 = arith.constant dense<0.000000e+00> : vector<48x128xf32>
    %30 = tpu.matmul %29, %28, %cst_9 {dimension_numbers = #tpu.dot_dimension_numbers<[1], [0], [0], [1], [0, 0, 1, 1], [], []>} : vector<48x32xf32>, vector<32x128xf32>, vector<48x128xf32> -> vector<48x128xf32>
    %31 = vector.extract_strided_slice %30 {offsets = [0, 0], sizes = [16, 128], strides = [1, 1]} : vector<48x128xf32> to vector<16x128xf32>
    %32 = vector.extract_strided_slice %30 {offsets = [16, 0], sizes = [16, 128], strides = [1, 1]} : vector<48x128xf32> to vector<16x128xf32>
    %33 = vector.extract_strided_slice %30 {offsets = [32, 0], sizes = [16, 128], strides = [1, 1]} : vector<48x128xf32> to vector<16x128xf32>
    %cst_10 = arith.constant 0.000000e+00 : f32
    %34 = vector.broadcast %cst_10 : f32 to vector<16x8xf32>
    %35 = tpu.concatenate %31, %34 in 1 : vector<16x128xf32>, vector<16x8xf32> -> vector<16x136xf32>
    %36 = tpu.concatenate %34, %33 in 1 : vector<16x8xf32>, vector<16x128xf32> -> vector<16x136xf32>
    %37 = arith.addf %35, %36 : vector<16x136xf32>
    %38 = tpu.concatenate %32, %34 in 1 : vector<16x128xf32>, vector<16x8xf32> -> vector<16x136xf32>
    %c0_11 = arith.constant 0 : index
    %c0_12 = arith.constant 0 : index
    %39 = vector.load %arg3[%c0_11, %c0_12] : memref<16x1xf32, #tpu.memory_space<vmem>>, vector<16x1xf32>
    %40 = vector.broadcast %39 : vector<16x1xf32> to vector<16x136xf32>
    %41 = arith.addf %37, %40 : vector<16x136xf32>
    %42 = vector.broadcast %39 : vector<16x1xf32> to vector<16x136xf32>
    %43 = arith.addf %38, %42 : vector<16x136xf32>
    %cst_13 = arith.constant 0.000000e+00 : f32
    %44 = vector.broadcast %cst_13 : f32 to vector<16x136xf32>
    %45 = arith.cmpf ogt, %41, %44 : vector<16x136xf32>
    %cst_14 = arith.constant 0.000000e+00 : f32
    %46 = vector.broadcast %cst_14 : f32 to vector<16x136xf32>
    %47 = arith.minimumf %41, %46 : vector<16x136xf32>
    %48 = math.exp %47 : vector<16x136xf32>
    %cst_15 = arith.constant 1.000000e+00 : f32
    %49 = vector.broadcast %cst_15 : f32 to vector<16x136xf32>
    %50 = arith.subf %48, %49 : vector<16x136xf32>
    %51 = arith.select %45, %41, %50 : vector<16x136xi1>, vector<16x136xf32>
    %cst_16 = arith.constant 0.000000e+00 : f32
    %52 = vector.broadcast %cst_16 : f32 to vector<16x136xf32>
    %53 = arith.cmpf ogt, %43, %52 : vector<16x136xf32>
    %cst_17 = arith.constant 0.000000e+00 : f32
    %54 = vector.broadcast %cst_17 : f32 to vector<16x136xf32>
    %55 = arith.minimumf %43, %54 : vector<16x136xf32>
    %56 = math.exp %55 : vector<16x136xf32>
    %cst_18 = arith.constant 1.000000e+00 : f32
    %57 = vector.broadcast %cst_18 : f32 to vector<16x136xf32>
    %58 = arith.subf %56, %57 : vector<16x136xf32>
    %59 = arith.select %53, %43, %58 : vector<16x136xi1>, vector<16x136xf32>
    %c0_19 = arith.constant 0 : index
    %c0_20 = arith.constant 0 : index
    %c0_21 = arith.constant 0 : index
    %c0_22 = arith.constant 0 : index
    %60 = vector.load %arg4[%c0_19, %c0_20, %c0_21, %c0_22] : memref<1x2x16x136xf32, #tpu.memory_space<vmem>>, vector<1x1x16x136xf32>
    %61 = vector.shape_cast %60 : vector<1x1x16x136xf32> to vector<16x136xf32>
    %62 = vector.shape_cast %51 : vector<16x136xf32> to vector<1x1x16x136xf32>
    tpu.vector_store %arg4[%c0_19, %c0_20, %c0_21, %c0_22], %62 {strides = array<i32>} : memref<1x2x16x136xf32, #tpu.memory_space<vmem>>, vector<1x1x16x136xf32>,
    %c0_23 = arith.constant 0 : index
    %c1 = arith.constant 1 : index
    %c0_24 = arith.constant 0 : index
    %c0_25 = arith.constant 0 : index
    %63 = vector.load %arg4[%c0_23, %c1, %c0_24, %c0_25] : memref<1x2x16x136xf32, #tpu.memory_space<vmem>>, vector<1x1x16x136xf32>
    %64 = vector.shape_cast %63 : vector<1x1x16x136xf32> to vector<16x136xf32>
    %65 = vector.shape_cast %59 : vector<16x136xf32> to vector<1x1x16x136xf32>
    tpu.vector_store %arg4[%c0_23, %c1, %c0_24, %c0_25], %65 {strides = array<i32>} : memref<1x2x16x136xf32, #tpu.memory_space<vmem>>, vector<1x1x16x136xf32>,
    return
  }
  func.func @transform_0(%arg0: i32) -> (i32, i32, i32) {
    %c0_i32 = arith.constant 0 : i32
    %c0_i32_0 = arith.constant 0 : i32
    %c0_i32_1 = arith.constant 0 : i32
    return %arg0, %c0_i32, %c0_i32_0 : i32, i32, i32
  }
  func.func @transform_1(%arg0: i32) -> (i32, i32) {
    %c0_i32 = arith.constant 0 : i32
    %c0_i32_0 = arith.constant 0 : i32
    %c0_i32_1 = arith.constant 0 : i32
    return %c0_i32, %c0_i32_0 : i32, i32
  }
  func.func @transform_2(%arg0: i32) -> (i32, i32) {
    %c0_i32 = arith.constant 0 : i32
    %c0_i32_0 = arith.constant 0 : i32
    %c0_i32_1 = arith.constant 0 : i32
    return %c0_i32, %c0_i32_0 : i32, i32
  }
  func.func @transform_3(%arg0: i32) -> (i32, i32, i32, i32) {
    %c0_i32 = arith.constant 0 : i32
    %c0_i32_0 = arith.constant 0 : i32
    %c0_i32_1 = arith.constant 0 : i32
    %c0_i32_2 = arith.constant 0 : i32
    return %arg0, %c0_i32, %c0_i32_0, %c0_i32_1 : i32, i32, i32, i32
  }
}

</mosaic_0001>

<llo_original>
// kernel: tpu_custom_call.1
$region0: #{tpu_custom_call.1}
  #allocation0 [shape = 'u32[]', space=smem, size = 0x4, offset = 0x4, fixed_abs, tag = 'smem constant byte address 0x4 - core index']
  #allocation1 [shape = 'u32[144,128]{1,0:T(1,128)}', space=vmem, size = 0x12000, scoped, tag = 'internal scratch']
  %s0 = inlined_call_operand.vmem [shape: f32[2,16,128], index: 0, kind: input, shape index: {}]
  %s1 = inlined_call_operand.vmem [shape: f32[48,32], index: 1, kind: input, shape index: {}]
  %s2 = inlined_call_operand.vmem [shape: f32[16,1], index: 2, kind: input, shape index: {}]
  %s3 = inlined_call_operand.hbm [shape: f32[2,2,16,136], index: 3, kind: output, shape index: {}]
  %s4 = sld [smem:[#allocation0]]
  $region45: #{tpu_custom_call.1} parent=0
    _
  %s6 = ssub.s32 1, %s4
  %s7 = scalar_select 0, %s6, %s4
  $region1: #{tpu_custom_call.1} parent=0
    #allocation2 [shape = 'u8[65536]{0}', space=vmem, size = 0x10000, scoped, tag = 'output window, operand 0']
    #allocation3 [shape = 's32[2]{0}', space=sflag, size = 0x8, scoped, tag = 'scoped memory for tpu_custom_call.1']
    %8 = vsyncpa [#allocation3], 0
    %s9 = scalar_lea.sflag [#allocation3], 1
    %10 = vsyncpa %s9, 0
    loop: start=0, step=1, limit=4
    $region2: #{tpu_custom_call.1} parent=1 // loop_pre_header
      _
    $region3: #{tpu_custom_call.1} parent=1 // loop_header
      %s12 = sphi 0, %s16
      %p13 = scmp.ge.s32.totalorder %s12, 4
      %s22 = sphi 0, %s24
      %s25 = sphi 0, %s22
      %s26 = sphi 0, %s25
      %s42 = sphi 0, %s26
      %s46 = sphi 0, %s46
      %s48 = sphi 0, %s46
      %s49 = sphi 0, %s48
      %s63 = sphi 0, %s49
      %s67 = sphi 0, %s67
      %s69 = sphi 0, %s67
      %s70 = sphi 0, %s69
      %s84 = sphi 0, %s70
      %s90 = sphi 0, %s92
      %s93 = sphi 0, %s90
      %s94 = sphi 0, %s93
      %s110 = sphi 0, %s94
    $region4: #{tpu_custom_call.1} parent=1 // loop_header_branch
      %15 = sbr.rel (%p13) target = $region8
    $region5: #{tpu_custom_call.1} parent=1 // loop_body
      %s17 = ssub.s32 %s12, 1
      %s18 = ssub.s32 %s12, 2
      %s19 = sadd.s32 %s12, 1
      %s20 = ssub.s32 %s12, %s19
      %p21 = scmp.eq.s32.totalorder %s20, 0
      %s23 = sadd.s32 %s22, 1
      %s24 = scalar_select %p21, %s22, %s23
      %p27 = pneg %p21
      %p28 = scmp.eq.s32.totalorder %s12, 1
      %p29 = por %p27, %p28
      %p30 = scmp.ne.s32.totalorder %s22, %s25
      %p31 = scmp.eq.s32.totalorder %s12, 0
      %p32 = por %p30, %p31
      %p33 = scmp.ne.s32.totalorder %s22, %s25
      %p34 = scmp.eq.s32.totalorder %s17, 1
      %p35 = por %p33, %p34
      %p36 = scmp.ne.s32.totalorder %s25, %s26
      %p37 = scmp.eq.s32.totalorder %s17, 0
      %p38 = por %p36, %p37
      %p39 = scmp.ne.s32.totalorder %s25, %s26
      %p40 = scmp.eq.s32.totalorder %s18, 1
      %p41 = por %p39, %p40
      %p43 = scmp.ne.s32.totalorder %s26, %s42
      %p44 = scmp.eq.s32.totalorder %s18, 0
      %p45 = por %p43, %p44
      %s47 = sadd.s32 %s46, 1
      %p50 = scmp.eq.s32.totalorder %s12, 1
      %p51 = scmp.ne.s32.totalorder %s46, %s48
      %p52 = scmp.eq.s32.totalorder %s12, 0
      %p53 = por %p51, %p52
      %p54 = scmp.ne.s32.totalorder %s46, %s48
      %p55 = scmp.eq.s32.totalorder %s17, 1
      %p56 = por %p54, %p55
      %p57 = scmp.ne.s32.totalorder %s48, %s49
      %p58 = scmp.eq.s32.totalorder %s17, 0
      %p59 = por %p57, %p58
      %p60 = scmp.ne.s32.totalorder %s48, %s49
      %p61 = scmp.eq.s32.totalorder %s18, 1
      %p62 = por %p60, %p61
      %p64 = scmp.ne.s32.totalorder %s49, %s63
      %p65 = scmp.eq.s32.totalorder %s18, 0
      %p66 = por %p64, %p65
      %s68 = sadd.s32 %s67, 1
      %p71 = scmp.eq.s32.totalorder %s12, 1
      %p72 = scmp.ne.s32.totalorder %s67, %s69
      %p73 = scmp.eq.s32.totalorder %s12, 0
      %p74 = por %p72, %p73
      %p75 = scmp.ne.s32.totalorder %s67, %s69
      %p76 = scmp.eq.s32.totalorder %s17, 1
      %p77 = por %p75, %p76
      %p78 = scmp.ne.s32.totalorder %s69, %s70
      %p79 = scmp.eq.s32.totalorder %s17, 0
      %p80 = por %p78, %p79
      %p81 = scmp.ne.s32.totalorder %s69, %s70
      %p82 = scmp.eq.s32.totalorder %s18, 1
      %p83 = por %p81, %p82
      %p85 = scmp.ne.s32.totalorder %s70, %s84
      %p86 = scmp.eq.s32.totalorder %s18, 0
      %p87 = por %p85, %p86
      %s88 = ssub.s32 %s12, %s19
      %p89 = scmp.eq.s32.totalorder %s88, 0
      %s91 = sadd.s32 %s90, 1
      %s92 = scalar_select %p89, %s90, %s91
      %p95 = pneg %p89
      %p96 = scmp.eq.s32.totalorder %s12, 1
      %p97 = por %p95, %p96
      %p98 = scmp.ne.s32.totalorder %s90, %s93
      %p99 = scmp.eq.s32.totalorder %s12, 0
      %p100 = por %p98, %p99
      %p101 = scmp.ne.s32.totalorder %s90, %s93
      %p102 = scmp.eq.s32.totalorder %s17, 1
      %p103 = por %p101, %p102
      %p104 = scmp.ne.s32.totalorder %s93, %s94
      %p105 = scmp.eq.s32.totalorder %s17, 0
      %p106 = por %p104, %p105
      %p107 = scmp.ne.s32.totalorder %s93, %s94
      %p108 = scmp.eq.s32.totalorder %s18, 1
      %p109 = por %p107, %p108
      %p111 = scmp.ne.s32.totalorder %s94, %s110
      %p112 = scmp.eq.s32.totalorder %s18, 0
      %p113 = por %p111, %p112
      %p114 = scmp.le.s32.totalorder 1, %s12
      %p115 = scmp.lt.s32.totalorder %s12, 3
      %p116 = pnand %p114, %p115
      %p117 = pneg %p116
      // Predicated region
      $region9: #{tpu_custom_call.1} parent=5 // pred_check
        _
      $region10: #{tpu_custom_call.1} parent=5 // pred_check_branch
        %119 = sbr.rel (%p116) target = $region12
      $region11: #{tpu_custom_call.1} parent=5 // pred_region
        %s120 = ssub.s32 %s12, 1
        // Predicated region
        $region13: #{tpu_custom_call.1} parent=11 // pred_check
          %p121 = pneg %p59
        $region14: #{tpu_custom_call.1} parent=11 // pred_check_branch
          %123 = sbr.rel (%p121) target = $region16
        $region15: #{tpu_custom_call.1} parent=11 // pred_region
          _
        $region16: #{tpu_custom_call.1} parent=11 // pred_fallthru
          _
        // Predicated region
        $region17: #{tpu_custom_call.1} parent=11 // pred_check
          %p124 = pneg %p80
        $region18: #{tpu_custom_call.1} parent=11 // pred_check_branch
          %126 = sbr.rel (%p124) target = $region20
        $region19: #{tpu_custom_call.1} parent=11 // pred_region
          _
        $region20: #{tpu_custom_call.1} parent=11 // pred_fallthru
          _
      $region12: #{tpu_custom_call.1} parent=5 // pred_fallthru
        _
      %p127 = scmp.lt.s32.totalorder %s12, 2
      // Predicated region
      $region21: #{tpu_custom_call.1} parent=5 // pred_check
        %p128 = pneg %p127
      $region22: #{tpu_custom_call.1} parent=5 // pred_check_branch
        %130 = sbr.rel (%p128) target = $region24
      $region23: #{tpu_custom_call.1} parent=5 // pred_region
        // Predicated region
        $region25: #{tpu_custom_call.1} parent=23 // pred_check
          %p131 = pneg %p32
        $region26: #{tpu_custom_call.1} parent=23 // pred_check_branch
          %133 = sbr.rel (%p131) target = $region28
        $region27: #{tpu_custom_call.1} parent=23 // pred_region
          %p134 = scmp.lt.s32.totalorder %s12, 1
          %s135 = scalar_select %p134, %s12, 1
          %s136 = smul.addr %s135, 2
          %s137 = smul.addr %s136, 8
          %s138 = scalar_lea.vmem %s0, %s137
        $region28: #{tpu_custom_call.1} parent=23 // pred_fallthru
          _
      $region24: #{tpu_custom_call.1} parent=5 // pred_fallthru
        _
      %p139 = scmp.le.s32.totalorder 1, %s12
      %p140 = scmp.lt.s32.totalorder %s12, 3
      %p141 = pnand %p139, %p140
      %p142 = pneg %p141
      // Predicated region
      $region29: #{tpu_custom_call.1} parent=5 // pred_check
        _
      $region30: #{tpu_custom_call.1} parent=5 // pred_check_branch
        %144 = sbr.rel (%p141) target = $region32
      $region31: #{tpu_custom_call.1} parent=5 // pred_region
        %s145 = ssub.s32 %s12, 1
        %p146 = scmp.lt.s32.totalorder %s17, 1
        %s147 = scalar_select %p146, %s17, 1
        %s148 = smul.addr %s147, 2
        %s149 = smul.addr %s148, 8
        %s150 = scalar_lea.vmem %s0, %s149
        %p151 = pneg %p38
        %p152 = pneg %p35
        %p153 = pneg %p59
        %p154 = pneg %p56
        %p155 = pneg %p80
        %p156 = pneg %p77
        %p157 = pneg %p106
        %p158 = pneg %p103
        %s159 = sand.u32 %s93, 1
        %s160 = scalar_lea.sflag [#allocation3], %s159
        %s161 = sand.u32 %s93, 1
        %s162 = smul.addr %s161, 64
        %s163 = scalar_lea.vmem [#allocation2], %s162
        %p164 = scmp.lt.s32.totalorder %s17, 1
        %s165 = scalar_select %p164, %s17, 1
        %s166 = smul.addr %s165, 2
        %s167 = smul.addr %s166, 8
        %s168 = scalar_lea.vmem %s0, %s167
        %v169 = vld [vmem:[%s168] sm:$0xff]
        %v170 = vld [vmem:[%s168 + $0x8] sm:$0xff]
        %173 = vrot.lane.b32.xlu0 %v169, 1
        %v174 = vpop.permute.xlu0 %173
        %175 = vrot.lane.b32.xlu0 %v170, 1
        %v176 = vpop.permute.xlu0 %175
        %vm179 = vcmask 7168
        %v180 = vsel %vm179, 0.0, %v174
        %v181 = vsel %vm179, 0.0, %v176
        %v182 = vlaneseq
        %v183 = vand.u32 %v182, 127
        %vm184 = vcmp.lt.s32.totalorder %v183, 0
        %v185 = vsub.s32 0, %v183
        %v186 = vsel %vm184, %v185, %v183
        %v187 = vshrl.u32 %v186, 3
        %v188 = vand.u32 %v186, 7
        %v189 = vsub.s32 0, %v188
        %v190 = vsel %vm184, %v189, %v188
        %vm191 = vcmp.ne.s32.totalorder %v190, 0
        %vm192 = vcmp.lt.s32.totalorder %v190, 0
        %vm193 = vmand %vm192, %vm191
        %v194 = vadd.s32 %v190, 8
        %v195 = vsel %vm193, %v194, %v190
        %vm196 = vcmp.eq.s32.totalorder %v195, 0
        %v197 = vsel %vm196, 1, 0
        %vm198 = vcmp.eq.s32.totalorder %v197, 1
        %v199 = vsel %vm198, 0.0, %v180
        %v200 = vsel %vm198, 0.0, %v181
        %v201 = vld [vmem:[%s1] sm:$0xff]
        %v202 = vld [vmem:[%s1 + $0x8] sm:$0xff]
        %v203 = vld [vmem:[%s1 + $0x10] sm:$0xff]
        %v204 = vld [vmem:[%s1 + $0x18] sm:$0xff]
        %v205 = vld [vmem:[%s1 + $0x20] sm:$0xff]
        %v206 = vld [vmem:[%s1 + $0x28] sm:$0xff]
        %vm207 = vcmask 261120
        %v209 = vsel %vm207, %v201, 0
        %v212 = vsel %vm207, %v202, 0
        %v215 = vsel %vm207, %v203, 0
        %v218 = vsel %vm207, %v204, 0
        %v221 = vsel %vm207, %v205, 0
        %v224 = vsel %vm207, %v206, 0
        %226 = vmatprep.subr.mxu0 0.0
        %227 = vmatpush1.msra.mxu0 %v169
        %228 = vmatprep.subr.mxu0 0.0
        %229 = vmatpush1.msra.mxu0 %v170
        %230 = vmatprep.subr.mxu0 0.0
        %231 = vmatpush1.msra.mxu0 %v199
        %232 = vmatprep.subr.mxu0 0.0
        %233 = vmatpush1.msra.mxu0 %v200
        %234 = vmatprep.subr.mxu0 0.0
        %235 = vmatpush1.msra.mxu0 0.0
        %236 = vmatprep.subr.mxu0 0.0
        %237 = vmatpush1.msra.mxu0 0.0
        %238 = vmatprep.subr.mxu0 0.0
        %239 = vmatpush1.msra.mxu0 0.0
        %240 = vmatprep.subr.mxu0 0.0
        %241 = vmatpush1.msra.mxu0 0.0
        %242 = vmatprep.subr.mxu0 0.0
        %243 = vmatpush1.msra.mxu0 0.0
        %244 = vmatprep.subr.mxu0 0.0
        %245 = vmatpush1.msra.mxu0 0.0
        %246 = vmatprep.subr.mxu0 0.0
        %247 = vmatpush1.msra.mxu0 0.0
        %248 = vmatprep.subr.mxu0 0.0
        %249 = vmatpush1.msra.mxu0 0.0
        %250 = vmatprep.subr.mxu0 0.0
        %251 = vmatpush1.msra.mxu0 0.0
        %252 = vmatprep.subr.mxu0 0.0
        %253 = vmatpush1.msra.mxu0 0.0
        %254 = vmatprep.subr.mxu0 0.0
        %255 = vmatpush1.msra.mxu0 0.0
        %256 = vmatprep.subr.mxu0 0.0
        %257 = vmatpush1.msra.mxu0 0.0
        %258 = vmatprep.subr.mxu0 0.0
        %259 = vmatpush1.msra.mxu0 0.0
        %260 = vmatprep.subr.mxu0 0.0
        %261 = vmatpush1.msra.mxu0 0.0
        %262 = vmatprep.subr.mxu0 0.0
        %263 = vmatpush1.msra.mxu0 0.0
        %264 = vmatprep.subr.mxu0 0.0
        %265 = vmatpush1.msra.mxu0 0.0
        %266 = vmatprep.subr.mxu0 0.0
        %267 = vmatpush1.msra.mxu0 0.0
        %268 = vmatprep.subr.mxu0 0.0
        %269 = vmatpush1.msra.mxu0 0.0
        %270 = vmatprep.subr.mxu0 0.0
        %271 = vmatpush1.msra.mxu0 0.0
        %272 = vmatprep.subr.mxu0 0.0
        %273 = vmatpush1.msra.mxu0 0.0
        %274 = vmatprep.subr.mxu0 0.0
        %275 = vmatpush1.msra.mxu0 0.0
        %276 = vmatprep.subr.mxu0 0.0
        %277 = vmatpush1.msra.mxu0 0.0
        %278 = vmatprep.subr.mxu0 0.0
        %279 = vmatpush1.msra.mxu0 0.0
        %280 = vmatprep.subr.mxu0 0.0
        %281 = vmatpush1.msra.mxu0 0.0
        %282 = vmatprep.subr.mxu0 0.0
        %283 = vmatpush1.msra.mxu0 0.0
        %284 = vmatprep.subr.mxu0 0.0
        %285 = vmatpush1.msra.mxu0 0.0
        %286 = vmatprep.subr.mxu0 0.0
        %287 = vmatpush1.msra.mxu0 0.0
        %288 = vmatprep.subr.mxu0 0.0
        %289 = vmatpush1.msra.mxu0 0.0
        %290 = vmatprep.mubr.f32.mxu0 0.0
        %291 = vmatmul.mubr.f32.gmra.mrb[0].mxu0 %v209
        %v292 = vpop.f32.mrb[0].mxu0
        %v293 = vadd.f32 0.0, %v292
        %v294 = vpop.f32.mrb[0].mxu0
        %295 = vmatprep.mubr.f32.mxu0 0.0
        %296 = vmatmul.mubr.f32.gmra.mrb[0].mxu0 %v212
        %v297 = vpop.f32.mrb[0].mxu0
        %v298 = vadd.f32 0.0, %v297
        %v299 = vpop.f32.mrb[0].mxu0
        %300 = vmatprep.mubr.f32.mxu0 0.0
        %301 = vmatmul.mubr.f32.gmra.mrb[0].mxu0 %v215
        %v302 = vpop.f32.mrb[0].mxu0
        %v303 = vadd.f32 0.0, %v302
        %v304 = vpop.f32.mrb[0].mxu0
        %305 = vmatprep.mubr.f32.mxu0 0.0
        %306 = vmatmul.mubr.f32.gmra.mrb[0].mxu0 %v218
        %v307 = vpop.f32.mrb[0].mxu0
        %v308 = vadd.f32 0.0, %v307
        %v309 = vpop.f32.mrb[0].mxu0
        %310 = vmatprep.mubr.f32.mxu0 0.0
        %311 = vmatmul.mubr.f32.gmra.mrb[0].mxu0 %v221
        %v312 = vpop.f32.mrb[0].mxu0
        %v313 = vadd.f32 0.0, %v312
        %v314 = vpop.f32.mrb[0].mxu0
        %315 = vmatprep.mubr.f32.mxu0 0.0
        %316 = vmatmul.mubr.f32.gmra.mrb[0].mxu0 %v224
        %v317 = vpop.f32.mrb[0].mxu0
        %v318 = vadd.f32 0.0, %v317
        %v319 = vpop.f32.mrb[0].mxu0
        %320 = vdwg.mxu0
        %323 = vrot.lane.b32.xlu0 %v313, 8
        %v324 = vpop.permute.xlu0 %323
        %325 = vrot.lane.b32.xlu0 %v318, 8
        %v326 = vpop.permute.xlu0 %325
        %vm329 = vcmask 64512
        %v330 = vsel %vm329, 0.0, %v324
        %v331 = vsel %vm329, 0.0, %v326
        %v332 = vadd.f32 %v293, %v330
        %v333 = vadd.f32 %v324, 0.0
        %v334 = vadd.f32 %v298, %v331
        %v335 = vadd.f32 %v326, 0.0
        %v336 = vld [vmem:[%s2] sm:$0xff]
        %v337 = vld [vmem:[%s2 + $0x8] sm:$0xff]
        %339 = vset.pattern.permute.xlu0 0
        %340 = vperm.xlu0 %339, %v336
        %v341 = vpop.permute.xlu0 %340
        %344 = vset.pattern.permute.xlu0 0
        %345 = vperm.xlu0 %344, %v337
        %v346 = vpop.permute.xlu0 %345
        %v348 = vadd.f32 %v332, %v341
        %v349 = vadd.f32 %v333, %v341
        %v350 = vadd.f32 %v334, %v346
        %v351 = vadd.f32 %v335, %v346
        %v352 = vadd.f32 %v303, %v341
        %v353 = vadd.f32 %v341, 0.0
        %v354 = vadd.f32 %v308, %v346
        %v355 = vadd.f32 %v346, 0.0
        %vm356 = vcmp.gt.f32.partialorder %v348, 0.0
        %vm357 = vcmp.gt.f32.partialorder %v349, 0.0
        %vm358 = vcmp.gt.f32.partialorder %v350, 0.0
        %vm359 = vcmp.gt.f32.partialorder %v351, 0.0
        %v360 = vmin.f32 %v348, 0.0
        %v361 = vmin.f32 %v349, 0.0
        %v362 = vmin.f32 %v350, 0.0
        %v363 = vmin.f32 %v351, 0.0
        %v364 = vmul.f32 %v360, 1.442695
        %v365 = vpow.pop %v364
        %v366 = vmul.f32 %v361, 1.442695
        %v367 = vpow.pop %v366
        %v368 = vmul.f32 %v362, 1.442695
        %v369 = vpow.pop %v368
        %v370 = vmul.f32 %v363, 1.442695
        %v371 = vpow.pop %v370
        %v372 = vsub.f32 %v365, 1.0
        %v373 = vsub.f32 %v367, 1.0
        %v374 = vsub.f32 %v369, 1.0
        %v375 = vsub.f32 %v371, 1.0
        %v376 = vsel %vm356, %v348, %v372
        %v377 = vsel %vm357, %v349, %v373
        %v378 = vsel %vm358, %v350, %v374
        %v379 = vsel %vm359, %v351, %v375
        %vm380 = vcmp.gt.f32.partialorder %v352, 0.0
        %vm381 = vcmp.gt.f32.partialorder %v353, 0.0
        %vm382 = vcmp.gt.f32.partialorder %v354, 0.0
        %vm383 = vcmp.gt.f32.partialorder %v355, 0.0
        %v384 = vmin.f32 %v352, 0.0
        %v385 = vmin.f32 %v353, 0.0
        %v386 = vmin.f32 %v354, 0.0
        %v387 = vmin.f32 %v355, 0.0
        %v388 = vmul.f32 %v384, 1.442695
        %v389 = vpow.pop %v388
        %v390 = vmul.f32 %v385, 1.442695
        %v391 = vpow.pop %v390
        %v392 = vmul.f32 %v386, 1.442695
        %v393 = vpow.pop %v392
        %v394 = vmul.f32 %v387, 1.442695
        %v395 = vpow.pop %v394
        %v396 = vsub.f32 %v389, 1.0
        %v397 = vsub.f32 %v391, 1.0
        %v398 = vsub.f32 %v393, 1.0
        %v399 = vsub.f32 %v395, 1.0
        %v400 = vsel %vm380, %v352, %v396
        %v401 = vsel %vm381, %v353, %v397
        %v402 = vsel %vm382, %v354, %v398
        %v403 = vsel %vm383, %v355, %v399
        %404 = vst [vmem:[%s163] sm:$0xff] %v376
        %405 = vst.msk [vmem:[%s163 + $0x8] sm:$0xff] %vm329, %v377
        %406 = vst [vmem:[%s163 + $0x10] sm:$0xff] %v378
        %407 = vst.msk [vmem:[%s163 + $0x18] sm:$0xff] %vm329, %v379
        %s408 = scalar_lea.vmem %s163, 32 [#allocation2]
        %409 = vst [vmem:[%s408] sm:$0xff] %v400
        %410 = vst.msk [vmem:[%s408 + $0x8] sm:$0xff] %vm329, %v401
        %411 = vst [vmem:[%s408 + $0x10] sm:$0xff] %v402
        %412 = vst.msk [vmem:[%s408 + $0x18] sm:$0xff] %vm329, %v403
        %s413 = sand.u32 %s93, 1
        %s414 = scalar_lea.sflag [#allocation3], %s413
        %s415 = sand.u32 %s93, 1
        %s416 = smul.addr %s415, 64
        %s417 = scalar_lea.vmem [#allocation2], %s416
        // Predicated region
        $region33: #{tpu_custom_call.1} parent=31 // pred_check
          %p418 = pneg %p103
        $region34: #{tpu_custom_call.1} parent=31 // pred_check_branch
          %420 = sbr.rel (%p418) target = $region36
        $region35: #{tpu_custom_call.1} parent=31 // pred_region
          %s422 = ssub.s32 1024, 1024
          %423 = vsyncadd %s414, %s422
          %s424 = smul.addr %s17, 8
          %s425 = smul.addr %s424, 128
          %s426 = scalar_lea.hbm %s3, %s425
          %s427 = sshll.u32 %s417, 4
          %s428 = int_to_ptr.vmem [resolvable:$true] %s427
          %433 = dma.vmem_to_hbm [thread:$0]  %s428, 1024, %s426, %s414, 256, 256, 16
        $region36: #{tpu_custom_call.1} parent=31 // pred_fallthru
          _
      $region32: #{tpu_custom_call.1} parent=5 // pred_fallthru
        _
      %p434 = scmp.le.s32.totalorder 2, %s12
      // Predicated region
      $region37: #{tpu_custom_call.1} parent=5 // pred_check
        %p435 = pneg %p434
      $region38: #{tpu_custom_call.1} parent=5 // pred_check_branch
        %437 = sbr.rel (%p435) target = $region40
      $region39: #{tpu_custom_call.1} parent=5 // pred_region
        %s438 = ssub.s32 %s12, 2
        // Predicated region
        $region41: #{tpu_custom_call.1} parent=39 // pred_check
          %p439 = pneg %p109
        $region42: #{tpu_custom_call.1} parent=39 // pred_check_branch
          %441 = sbr.rel (%p439) target = $region44
        $region43: #{tpu_custom_call.1} parent=39 // pred_region
          %s442 = sand.u32 %s94, 1
          %s443 = scalar_lea.sflag [#allocation3], %s442
          %s444 = sand.u32 %s94, 1
          %s445 = smul.addr %s444, 64
          %s446 = scalar_lea.vmem [#allocation2], %s445
          %447 = dma.done %s443, 1024
        $region44: #{tpu_custom_call.1} parent=39 // pred_fallthru
          _
      $region40: #{tpu_custom_call.1} parent=5 // pred_fallthru
        _
    $region6: #{tpu_custom_call.1} parent=1 // loop_footer
      %s16 = sadd.s32 1, %s12
    $region7: #{tpu_custom_call.1} parent=1 // loop_footer_branch
      %11 = sbr.rel target = $region3
    $region8: #{tpu_custom_call.1} parent=1 // loop_exit
      _
    %448 = vsyncpa [#allocation3], 1
    %s449 = scalar_lea.sflag [#allocation3], 1
    %450 = vsyncpa %s449, 1

</llo_original>
